<compile_context>
chip_gen: v6e
topology: v6e:2x2x1
jax: 0.10.0
libtpu: 0.0.40
codegen_flags: <defaults>
</compile_context>

<pallas_src>
import numpy as np
import jax
import jax.numpy as jnp
from jax.experimental import pallas as pl
from jax.experimental.pallas import tpu as pltpu

SHIFT = float(np.log(2.0))

_TARGET_BLOCK_BYTES = 4 * 1024 * 1024   # f32-equivalent per-block footprint
_MIN_SPLIT_BYTES = 2 * 1024 * 1024      # force >=2 grid steps above this (v7x megacore)
_VMEM_LIMIT_BYTES = 48 * 1024 * 1024    # 2x(in+out) buffers + f32 temps, < v7x 64 MiB


def _shifted_softplus_kernel(x_ref, o_ref):
    x = x_ref[...].astype(jnp.float32)
    # numerically stable softplus: max(x, 0) + log1p(exp(-|x|))
    sp = jnp.maximum(x, 0.0) + jnp.log1p(jnp.exp(-jnp.abs(x)))
    o_ref[...] = (sp - SHIFT).astype(o_ref.dtype)
    # TODO(synk): for bf16 inputs on v6e/v7x the exp/log1p chain could run in
    # bf16 on the EUP to halve transcendental pressure; kept in f32 for
    # accuracy and v5e compatibility (no bf16 EUP).


def _shifted_softplus_jnp(x):
    """Plain-JAX fallback for tiny / pathological shapes (same math)."""
    xf = x.astype(jnp.float32)
    sp = jnp.maximum(xf, 0.0) + jnp.log1p(jnp.exp(-jnp.abs(xf)))
    return (sp - SHIFT).astype(x.dtype)


def _round_up(v: int, m: int) -> int:
    return -(-v // m) * m


def _pick_lanes(n: int):
    """Pick a last-dim width that divides n exactly (zero-copy reshape).

    Returns (lanes, lane_dense). lane_dense==True means lanes is a multiple of
    128 (unmasked vector stores). Otherwise the block's last dim equals the
    full array dim (always legal), at the cost of masked stores / lane padding
    in VMEM — still 1x HBM traffic, far cheaper than pad+slice copies.
    """
    for lanes in (1024, 512, 256, 128):
        if n % lanes == 0:
            return lanes, True
    for lanes in range(1024, 63, -1):
        if n % lanes == 0:
            return lanes, False
    return None, False


def _choose_block_rows(rows: int, lanes: int, itemsize: int) -> int:
    padded_lanes = _round_up(lanes, 128)            # VMEM lane padding
    per_row = padded_lanes * max(int(itemsize), 4)  # budget f32 intermediates
    block_rows = max(_TARGET_BLOCK_BYTES // per_row, 32)
    block_rows -= block_rows % 32                   # sublane packing (f32/bf16/i8)

    # v7x megacore: give the "parallel" grid axis at least 2 steps for
    # medium/large inputs so both TensorCores get work.
    if rows * lanes * itemsize >= _MIN_SPLIT_BYTES:
        half = _round_up(pl.cdiv(rows, 2), 32)
        if half < rows:
            block_rows = min(block_rows, half)

    if rows <= block_rows:
        return rows                                 # single block, full dims (legal)

    num = pl.cdiv(rows, block_rows)
    if num % 2:                                     # balance across the 2 v7x TCs
        cand = _round_up(pl.cdiv(rows, num + 1), 32)
        if 0 < cand < rows:
            block_rows = cand
    return block_rows


def _run_kernel(slab: jax.Array) -> jax.Array:
    rows, lanes = slab.shape
    dtype = slab.dtype
    itemsize = jnp.dtype(dtype).itemsize
    block_rows = _choose_block_rows(rows, lanes, itemsize)
    grid = (pl.cdiv(rows, block_rows),)

    total = rows * lanes
    cost = pl.CostEstimate(
        flops=3 * total,
        transcendentals=2 * total,          # exp + log1p per element
        bytes_accessed=2 * total * itemsize,
    )

    return pl.pallas_call(
        _shifted_softplus_kernel,
        out_shape=jax.ShapeDtypeStruct((rows, lanes), dtype),
        grid_spec=pltpu.PrefetchScalarGridSpec(
            num_scalar_prefetch=0,
            grid=grid,
            in_specs=[pl.BlockSpec((block_rows, lanes), lambda i: (i, 0))],
            out_specs=pl.BlockSpec((block_rows, lanes), lambda i: (i, 0)),
        ),
        compiler_params=pltpu.CompilerParams(
            dimension_semantics=("parallel",),
            vmem_limit_bytes=_VMEM_LIMIT_BYTES,
        ),
        cost_estimate=cost,
    )(slab)


def shifted_softplus(x: jax.Array) -> jax.Array:
    """Elementwise shifted softplus, semantics identical to the torch module."""
    orig_shape = x.shape
    n = int(np.prod(orig_shape)) if x.ndim else 1
    if n == 0:
        return x

    flat = x.reshape(-1)
    lanes, _dense = _pick_lanes(n)

    if lanes is None:
        # No usable divisor (prime-ish element count). Tiny: plain jnp.
        if n <= (1 << 16):
            return _shifted_softplus_jnp(flat).reshape(orig_shape)
        # Rare large pathological case: pad to a 128 multiple (one extra copy
        # each way) — never hit for realistic feature-tensor shapes.
        pad = (-n) % 128
        padded = jnp.pad(flat, (0, pad))
        out = _run_kernel(padded.reshape(-1, 128))
        return out.reshape(-1)[:n].reshape(orig_shape)

    rows = n // lanes
    out = _run_kernel(flat.reshape(rows, lanes))   # reshape = free bitcast
    return out.reshape(orig_shape)


def _reference(x):
    return jnp.logaddexp(x.astype(jnp.float32), 0.0) - SHIFT


if __name__ == "__main__":
    key = jax.random.PRNGKey(0)
    k1, k2, k3, k4, k5 = jax.random.split(key, 5)

    # 1) Small NCHW-style input (matches the module's typical usage).
    x1 = jax.random.normal(k1, (2, 4, 16, 16), dtype=jnp.float32)
    y1 = jax.block_until_ready(shifted_softplus(x1))
    assert y1.shape == x1.shape and y1.dtype == x1.dtype
    np.testing.assert_allclose(np.asarray(y1), np.asarray(_reference(x1)),
                               atol=1e-6, rtol=1e-6)

    # 2) Larger input exercising the multi-block path and the odd->even grid
    #    rebalancing (rows=2560 -> 4 blocks of 640 rows).
    x2 = jax.random.normal(k2, (10, 16, 128, 128), dtype=jnp.float32) * 4.0
    y2 = jax.block_until_ready(shifted_softplus(x2))
    assert y2.shape == x2.shape and y2.dtype == x2.dtype
    np.testing.assert_allclose(np.asarray(y2), np.asarray(_reference(x2)),
                               atol=1e-6, rtol=1e-6)

    # 3) Tiny ragged shape: zero-copy full-dim block (no pad / slice copies).
    x3 = jax.random.normal(k3, (3, 5, 7), dtype=jnp.float32)
    y3 = jax.block_until_ready(shifted_softplus(x3))
    assert y3.shape == x3.shape and y3.dtype == x3.dtype
    np.testing.assert_allclose(np.asarray(y3), np.asarray(_reference(x3)),
                               atol=1e-6, rtol=1e-6)

    # 4) Ragged, not 128-divisible but with a usable divisor (zero-copy path).
    x4 = jax.random.normal(k4, (17, 129), dtype=jnp.float32) * 3.0
    y4 = jax.block_until_ready(shifted_softplus(x4))
    assert y4.shape == x4.shape and y4.dtype == x4.dtype
    np.testing.assert_allclose(np.asarray(y4), np.asarray(_reference(x4)),
                               atol=1e-6, rtol=1e-6)

    # 5) bf16 input (f32 internal compute), loose tolerance vs f32 reference.
    x5 = jax.random.normal(k5, (4, 256, 128), dtype=jnp.bfloat16)
    y5 = jax.block_until_ready(shifted_softplus(x5))
    assert y5.shape == x5.shape and y5.dtype == x5.dtype
    np.testing.assert_allclose(np.asarray(y5, dtype=np.float32),
                               np.asarray(_reference(x5)),
                               atol=1.5e-2, rtol=1.5e-2)

    print("KERNEL_OK")
</pallas_src>

<mosaic_0001>
module attributes {stable_mosaic.version = 11 : i64} {
  func.func @_shifted_softplus_kernel(%arg0: i32, %arg1: memref<2x1024xf32, #tpu.memory_space<vmem>>, %arg2: memref<2x1024xf32, #tpu.memory_space<vmem>>) attributes {dimension_semantics = [#tpu.dimension_semantics<parallel>], iteration_bounds = array<i64: 1>, scalar_prefetch = 0 : i64, scratch_operands = 0 : i64, tpu.core_type = #tpu.core_type<tc>, window_params = [{transform_indices = @transform_0, window_bounds = array<i64: 2, 1024>}, {transform_indices = @transform_1, window_bounds = array<i64: 2, 1024>}]} {
    %c0 = arith.constant 0 : index
    %c0_0 = arith.constant 0 : index
    %0 = vector.load %arg1[%c0, %c0_0] : memref<2x1024xf32, #tpu.memory_space<vmem>>, vector<2x1024xf32>
    %cst = arith.constant 0.000000e+00 : f32
    %1 = vector.broadcast %cst : f32 to vector<2x1024xf32>
    %2 = arith.maximumf %0, %1 : vector<2x1024xf32>
    %3 = math.absf %0 : vector<2x1024xf32>
    %cst_1 = arith.constant 0.000000e+00 : f32
    %4 = vector.broadcast %cst_1 : f32 to vector<2x1024xf32>
    %5 = arith.subf %4, %3 : vector<2x1024xf32>
    %6 = math.exp %5 : vector<2x1024xf32>
    %7 = math.log1p %6 : vector<2x1024xf32>
    %8 = arith.addf %2, %7 : vector<2x1024xf32>
    %cst_2 = arith.constant 0.693147182 : f32
    %9 = vector.broadcast %cst_2 : f32 to vector<2x1024xf32>
    %10 = arith.subf %8, %9 : vector<2x1024xf32>
    %c0_3 = arith.constant 0 : index
    %c0_4 = arith.constant 0 : index
    %11 = vector.load %arg2[%c0_3, %c0_4] : memref<2x1024xf32, #tpu.memory_space<vmem>>, vector<2x1024xf32>
    tpu.vector_store %arg2[%c0_3, %c0_4], %10 {strides = array<i32>} : memref<2x1024xf32, #tpu.memory_space<vmem>>, vector<2x1024xf32>,
    return
  }
  func.func @transform_0(%arg0: i32) -> (i32, i32) {
    %c0_i32 = arith.constant 0 : i32
    %c0_i32_0 = arith.constant 0 : i32
    return %arg0, %c0_i32 : i32, i32
  }
  func.func @transform_1(%arg0: i32) -> (i32, i32) {
    %c0_i32 = arith.constant 0 : i32
    %c0_i32_0 = arith.constant 0 : i32
    return %arg0, %c0_i32 : i32, i32
  }
}

</mosaic_0001>

<llo_original>
// kernel: tpu_custom_call.1
$region0: #{tpu_custom_call.1}
  #allocation0 [shape = 'u32[]', space=smem, size = 0x4, offset = 0x4, fixed_abs, tag = 'smem constant byte address 0x4 - core index']
  #allocation1 [shape = 'u32[144,128]{1,0:T(1,128)}', space=vmem, size = 0x12000, scoped, tag = 'internal scratch']
  %s0 = inlined_call_operand.hbm [shape: f32[2,1024], index: 0, kind: input, shape index: {}]
  %s1 = inlined_call_operand.hbm [shape: f32[2,1024], index: 1, kind: output, shape index: {}]
  %s2 = sld [smem:[#allocation0]]
  $region18: #{tpu_custom_call.1} parent=0
    _
  %s4 = ssub.s32 1, %s2
  %s5 = scalar_select 0, %s4, %s2
  $region1: #{tpu_custom_call.1} parent=0
    #allocation2 [shape = 'u8[8192]{0}', space=vmem, size = 0x2000, scoped, tag = 'input window, operand 0, single buffered']
    #allocation3 [shape = 's32[1]{0}', space=sflag, size = 0x4, scoped, tag = 'scoped memory for tpu_custom_call.1']
    #allocation4 [shape = 's32[1]{0}', space=sflag, size = 0x4, scoped, tag = 'scoped memory for tpu_custom_call.1']
    #allocation5 [shape = 'u8[8192]{0}', space=vmem, size = 0x2000, scoped, tag = 'output window, operand 0, single buffered']
    %6 = vsyncpa [#allocation3], 0
    %7 = vsyncpa [#allocation4], 0
    // Predicated region
    $region2: #{tpu_custom_call.1} parent=1 // pred_check
      _
    $region3: #{tpu_custom_call.1} parent=1 // pred_check_branch
      %9 = sbr.rel (0) target = $region5
    $region4: #{tpu_custom_call.1} parent=1 // pred_region
      %s11 = ssub.s32 256, 256
      %12 = vsyncadd [#allocation3], %s11
      %s14 = sshll.u32 [#allocation2], 4
      %s15 = int_to_ptr.vmem [resolvable:$true] %s14
      %17 = dma.hbm_to_vmem [thread:$0]  %s0, 256, %s15, [#allocation3]
    $region5: #{tpu_custom_call.1} parent=1 // pred_fallthru
      _
    // Predicated region
    $region6: #{tpu_custom_call.1} parent=1 // pred_check
      _
    $region7: #{tpu_custom_call.1} parent=1 // pred_check_branch
      %19 = sbr.rel (0) target = $region9
    $region8: #{tpu_custom_call.1} parent=1 // pred_region
      %20 = dma.done [#allocation3], 256
    $region9: #{tpu_custom_call.1} parent=1 // pred_fallthru
      _
    %v21 = vld [vmem:[#allocation2] sm:$0xff]
    %v22 = vld [vmem:[#allocation2 + $0x8] sm:$0xff]
    %v23 = vmax.f32 %v21, 0.0
    %v24 = vmax.f32 %v22, 0.0
    %v25 = vand.u32 2147483647, %v21
    %v26 = vand.u32 2147483647, %v22
    %v27 = vsub.f32 0.0, %v25
    %v28 = vsub.f32 0.0, %v26
    %v29 = vmul.f32 %v27, 1.442695
    %v30 = vpow.pop %v29
    %v31 = vmul.f32 %v28, 1.442695
    %v32 = vpow.pop %v31
    %v33 = vadd.f32 %v30, 1.0
    %v34 = vlog2.pop %v33
    %v35 = vmul.f32 %v34, 0.6931472
    %v36 = vmul.f32 -0.5, %v30
    %v37 = vadd.f32 %v36, 1.0
    %v38 = vmul.f32 %v37, %v30
    %v39 = vand.u32 2147483647, %v30
    %vm40 = vcmp.lt.f32.partialorder %v39, 0.0004427343
    %v41 = vsel %vm40, %v38, %v35
    %v42 = vadd.f32 %v32, 1.0
    %v43 = vlog2.pop %v42
    %v44 = vmul.f32 %v43, 0.6931472
    %v45 = vmul.f32 -0.5, %v32
    %v46 = vadd.f32 %v45, 1.0
    %v47 = vmul.f32 %v46, %v32
    %v48 = vand.u32 2147483647, %v32
    %vm49 = vcmp.lt.f32.partialorder %v48, 0.0004427343
    %v50 = vsel %vm49, %v47, %v44
    %v51 = vadd.f32 %v23, %v41
    %v52 = vadd.f32 %v24, %v50
    %v53 = vsub.f32 %v51, 0.6931472
    %v54 = vsub.f32 %v52, 0.6931472
    %55 = vst [vmem:[#allocation5] sm:$0xff] %v53
    %56 = vst [vmem:[#allocation5 + $0x8] sm:$0xff] %v54
    // Predicated region
    $region10: #{tpu_custom_call.1} parent=1 // pred_check
      _
    $region11: #{tpu_custom_call.1} parent=1 // pred_check_branch
      %58 = sbr.rel (0) target = $region13
    $region12: #{tpu_custom_call.1} parent=1 // pred_region
      %s60 = ssub.s32 256, 256
      %61 = vsyncadd [#allocation4], %s60
      %s63 = sshll.u32 [#allocation5], 4
      %s64 = int_to_ptr.vmem [resolvable:$true] %s63
      %66 = dma.vmem_to_hbm [thread:$0]  %s64, 256, %s1, [#allocation4]
    $region13: #{tpu_custom_call.1} parent=1 // pred_fallthru
      _
    // Predicated region
    $region14: #{tpu_custom_call.1} parent=1 // pred_check
      _
    $region15: #{tpu_custom_call.1} parent=1 // pred_check_branch
      %68 = sbr.rel (0) target = $region17
    $region16: #{tpu_custom_call.1} parent=1 // pred_region
      %69 = dma.done [#allocation4], 256
    $region17: #{tpu_custom_call.1} parent=1 // pred_fallthru
      _
    %70 = vsyncpa [#allocation3], 1
    %71 = vsyncpa [#allocation4], 1

</llo_original>
